<compile_context>
chip_gen: v5e
topology: v5e:2x2
jax: 0.10.0
libtpu: 0.0.40
codegen_flags: <defaults>
</compile_context>

<pallas_src>
import functools

import jax
import jax.numpy as jnp
from jax import lax
from jax.experimental import pallas as pl
from jax.experimental.pallas import tpu as pltpu


_EPS = 1e-12            # torch F.normalize clamp on the L2 norm
_EPS_SQ = _EPS * _EPS   # same clamp applied to the squared norm


def _pairs_l1_kernel(x_ref, t_ref, o_ref, *, seq_len, ragged):
    """One grid step: L sequence positions, full batch.

    x_ref / t_ref : (B, L, E) tiles straight from the (B, N, E) HBM layout.
    o_ref         : (1, B, B) per-block partial |diff| sum (mean taken in JAX).
    """
    g = pl.program_id(0)

    xf = x_ref[...].astype(jnp.float32)        # (B, L, E)
    tf = t_ref[...].astype(jnp.float32)
    B, L, E = xf.shape

    # Pre-normalization (torch F.normalize(dim=-1), eps=1e-12):
    #   x / max(||x||, eps) == x * rsqrt(max(||x||^2, eps^2))   (EUP rsqrt)
    ix = lax.rsqrt(jnp.maximum(jnp.sum(xf * xf, axis=-1, keepdims=True), _EPS_SQ))
    it = lax.rsqrt(jnp.maximum(jnp.sum(tf * tf, axis=-1, keepdims=True), _EPS_SQ))
    xn = xf * ix                               # (B, L, E) unit rows
    tn = tf * it

    # Put the sequence axis in front so the Gram is a canonical batched matmul
    # (leading batch = L, contraction = E) the MXU handles directly.
    xn_t = jnp.transpose(xn, (1, 0, 2))        # (L, B, E)
    tn_t = jnp.transpose(tn, (1, 0, 2))

    # Cosine-similarity Grams directly (operands already normalized).
    cx = jnp.einsum("lbe,lce->lbc", xn_t, xn_t, preferred_element_type=jnp.float32)
    ct = jnp.einsum("lbe,lce->lbc", tn_t, tn_t, preferred_element_type=jnp.float32)

    diff = jnp.abs(cx - ct)                    # (L, B, B)

    if ragged:
        # Only emitted when N % L != 0: zero sequence positions past N.  The
        # padded VMEM contents are unspecified -> select, never multiply.
        pos = g * L + lax.broadcasted_iota(jnp.int32, (L, 1, 1), 0)
        diff = jnp.where(pos < seq_len, diff, 0.0)

    # Reduce only over the major (L) axis: VPU vreg adds, no XLU reduce.
    o_ref[...] = jnp.sum(diff, axis=0, keepdims=True)


def _vmem_budget_and_limit():
    """Scoped-VMEM limit ~75% of physical capacity (v7x: 64 MiB, v5e/v6e: 128 MiB);
    tile budget ~2/3 of that limit."""
    try:
        cap = pltpu.get_tpu_info().vmem_capacity_bytes
    except Exception:
        cap = 64 * 1024 * 1024
    vmem_limit = int(min(max(32 << 20, (cap * 3) // 4), 100 << 20))
    budget = (vmem_limit * 2) // 3
    return budget, vmem_limit


def _pick_block_l(B, N, E, in_itemsize, vmem_budget_bytes):
    """Largest sequence-positions-per-step tile that fits the VMEM budget, with a
    block-shape-legal L (multiple of the dtype-min sublane, or the full N)."""
    sublane = {4: 8, 2: 16, 1: 32}.get(in_itemsize, 8)
    per_pos = (
        2 * 2 * B * E * in_itemsize   # 2 input tensors x 2 pipeline buffers
        + 6 * B * E * 4               # f32 upcast / normalized / relayout working copies
        + 4 * B * B * 4               # Gram / cosine / |diff| f32 temporaries
    )
    l = int(vmem_budget_bytes) // max(per_pos, 1)
    if l >= N:
        return N                      # full axis: always a legal block dim
    l = (l // sublane) * sublane
    if l < sublane:
        l = min(sublane, N)           # smallest legal tile (vmem_limit has headroom)
    return l


def batch_embedding_alignment_loss(inp, tgt):
    """inp, tgt: (B, N, E). Scalar L1 loss between per-position cosine-similarity
    Gram matrices, matching the PyTorch BatchEmbeddingAlignmentLoss module."""
    assert inp.shape == tgt.shape, (inp.shape, tgt.shape)
    B, N, E = inp.shape

    budget, vmem_limit = _vmem_budget_and_limit()
    L = _pick_block_l(B, N, E, jnp.dtype(inp.dtype).itemsize, budget)
    num_blocks = pl.cdiv(N, L)

    partials = pl.pallas_call(
        functools.partial(_pairs_l1_kernel, seq_len=N, ragged=(N % L != 0)),
        out_shape=jax.ShapeDtypeStruct((num_blocks, B, B), jnp.float32),
        grid=(num_blocks,),
        in_specs=[
            pl.BlockSpec((B, L, E), lambda g: (0, g, 0)),
            pl.BlockSpec((B, L, E), lambda g: (0, g, 0)),
        ],
        out_specs=pl.BlockSpec((1, B, B), lambda g: (g, 0, 0)),
        compiler_params=pltpu.CompilerParams(
            dimension_semantics=("parallel",),
            vmem_limit_bytes=vmem_limit,
        ),
    )(inp, tgt)

    # L1Loss mean: always divide by the full logical N * B * B (not block-local sizes).
    return jnp.sum(partials) / jnp.float32(N * B * B)


def _reference(inp, tgt):
    """Pure-JAX reference mirroring the torch code, for sanity checking."""
    def pairs(a):
        a = a.astype(jnp.float32)
        an = a / jnp.maximum(jnp.linalg.norm(a, axis=-1, keepdims=True), _EPS)
        an = jnp.transpose(an, (1, 0, 2))                 # (N, B, E)
        return jnp.einsum("nbe,nce->nbc", an, an)         # (N, B, B)
    return jnp.mean(jnp.abs(pairs(inp) - pairs(tgt)))


if __name__ == "__main__":
    # BatchEmbeddingAlignmentLoss has no learnable parameters.
    B, N, E = 4, 8, 32
    key = jax.random.PRNGKey(0)
    k1, k2 = jax.random.split(key)
    inp = jax.random.normal(k1, (B, N, E), dtype=jnp.float32)
    tgt = jax.random.normal(k2, (B, N, E), dtype=jnp.float32)

    loss = batch_embedding_alignment_loss(inp, tgt)
    loss = jax.block_until_ready(loss)

    ref = _reference(inp, tgt)
    assert jnp.allclose(loss, ref, rtol=1e-5, atol=1e-5), (loss, ref)

    print("KERNEL_OK")
</pallas_src>

<mosaic_0001>
module attributes {stable_mosaic.version = 11 : i64} {
  func.func @_pairs_l1_kernel(%arg0: i32, %arg1: memref<4x8x32xf32, #tpu.memory_space<vmem>>, %arg2: memref<4x8x32xf32, #tpu.memory_space<vmem>>, %arg3: memref<1x4x4xf32, #tpu.memory_space<vmem>>) attributes {dimension_semantics = [#tpu.dimension_semantics<parallel>], iteration_bounds = array<i64: 1>, scalar_prefetch = 0 : i64, scratch_operands = 0 : i64, tpu.core_type = #tpu.core_type<tc>, window_params = [{transform_indices = @transform_0, window_bounds = array<i64: 4, 8, 32>}, {transform_indices = @transform_1, window_bounds = array<i64: 4, 8, 32>}, {transform_indices = @transform_2, window_bounds = array<i64: 1, 4, 4>}]} {
    %c0 = arith.constant 0 : index
    %c0_0 = arith.constant 0 : index
    %c0_1 = arith.constant 0 : index
    %0 = vector.load %arg1[%c0, %c0_0, %c0_1] : memref<4x8x32xf32, #tpu.memory_space<vmem>>, vector<4x8x32xf32>
    %c0_2 = arith.constant 0 : index
    %c0_3 = arith.constant 0 : index
    %c0_4 = arith.constant 0 : index
    %1 = vector.load %arg2[%c0_2, %c0_3, %c0_4] : memref<4x8x32xf32, #tpu.memory_space<vmem>>, vector<4x8x32xf32>
    %2 = arith.mulf %0, %0 : vector<4x8x32xf32>
    %cst = arith.constant dense<0.000000e+00> : vector<4x8xf32>
    %3 = vector.multi_reduction <add>, %2, %cst [2] : vector<4x8x32xf32> to vector<4x8xf32>
    %4 = vector.shape_cast %3 : vector<4x8xf32> to vector<4x8x1xf32>
    %cst_5 = arith.constant 1.000000e-24 : f32
    %5 = vector.broadcast %cst_5 : f32 to vector<4x8x1xf32>
    %6 = arith.maximumf %4, %5 : vector<4x8x1xf32>
    %7 = math.rsqrt %6 : vector<4x8x1xf32>
    %8 = arith.mulf %1, %1 : vector<4x8x32xf32>
    %cst_6 = arith.constant dense<0.000000e+00> : vector<4x8xf32>
    %9 = vector.multi_reduction <add>, %8, %cst_6 [2] : vector<4x8x32xf32> to vector<4x8xf32>
    %10 = vector.shape_cast %9 : vector<4x8xf32> to vector<4x8x1xf32>
    %cst_7 = arith.constant 1.000000e-24 : f32
    %11 = vector.broadcast %cst_7 : f32 to vector<4x8x1xf32>
    %12 = arith.maximumf %10, %11 : vector<4x8x1xf32>
    %13 = math.rsqrt %12 : vector<4x8x1xf32>
    %14 = vector.broadcast %7 : vector<4x8x1xf32> to vector<4x8x32xf32>
    %15 = arith.mulf %0, %14 : vector<4x8x32xf32>
    %16 = vector.broadcast %13 : vector<4x8x1xf32> to vector<4x8x32xf32>
    %17 = arith.mulf %1, %16 : vector<4x8x32xf32>
    %18 = tpu.transpose %15, [1, 0, 2] : vector<4x8x32xf32> -> vector<8x4x32xf32>
    %19 = tpu.transpose %17, [1, 0, 2] : vector<4x8x32xf32> -> vector<8x4x32xf32>
    "tpu.trace_start"() <{level = 10 : i32, message = "lbe,lce->lbc"}> : () -> ()
    %cst_8 = arith.constant dense<0.000000e+00> : vector<8x4x4xf32>
    %20 = tpu.matmul %18, %18, %cst_8 {dimension_numbers = #tpu.dot_dimension_numbers<[2], [2], [1], [1], [0, 0, 0, 1, 1, 1], [0], [0]>} : vector<8x4x32xf32>, vector<8x4x32xf32>, vector<8x4x4xf32> -> vector<8x4x4xf32>
    %cst_9 = arith.constant dense<0.000000e+00> : vector<8x4x4xf32>
    %21 = tpu.matmul %19, %19, %cst_9 {dimension_numbers = #tpu.dot_dimension_numbers<[2], [2], [1], [1], [0, 0, 0, 1, 1, 1], [0], [0]>} : vector<8x4x32xf32>, vector<8x4x32xf32>, vector<8x4x4xf32> -> vector<8x4x4xf32>
    "tpu.trace_stop"() : () -> ()
    %22 = arith.subf %20, %21 : vector<8x4x4xf32>
    %23 = math.absf %22 : vector<8x4x4xf32>
    %cst_10 = arith.constant dense<0.000000e+00> : vector<4x4xf32>
    %24 = vector.multi_reduction <add>, %23, %cst_10 [0] : vector<8x4x4xf32> to vector<4x4xf32>
    %25 = vector.shape_cast %24 : vector<4x4xf32> to vector<1x4x4xf32>
    %c0_11 = arith.constant 0 : index
    %c0_12 = arith.constant 0 : index
    %c0_13 = arith.constant 0 : index
    %26 = vector.load %arg3[%c0_11, %c0_12, %c0_13] : memref<1x4x4xf32, #tpu.memory_space<vmem>>, vector<1x4x4xf32>
    tpu.vector_store %arg3[%c0_11, %c0_12, %c0_13], %25 {strides = array<i32>} : memref<1x4x4xf32, #tpu.memory_space<vmem>>, vector<1x4x4xf32>,
    return
  }
  func.func @transform_0(%arg0: i32) -> (i32, i32, i32) {
    %c0_i32 = arith.constant 0 : i32
    %c0_i32_0 = arith.constant 0 : i32
    %c0_i32_1 = arith.constant 0 : i32
    return %c0_i32, %arg0, %c0_i32_0 : i32, i32, i32
  }
  func.func @transform_1(%arg0: i32) -> (i32, i32, i32) {
    %c0_i32 = arith.constant 0 : i32
    %c0_i32_0 = arith.constant 0 : i32
    %c0_i32_1 = arith.constant 0 : i32
    return %c0_i32, %arg0, %c0_i32_0 : i32, i32, i32
  }
  func.func @transform_2(%arg0: i32) -> (i32, i32, i32) {
    %c0_i32 = arith.constant 0 : i32
    %c0_i32_0 = arith.constant 0 : i32
    %c0_i32_1 = arith.constant 0 : i32
    return %arg0, %c0_i32, %c0_i32_0 : i32, i32, i32
  }
}

</mosaic_0001>

<llo_original>
// kernel: tpu_custom_call.1
$region0: #{tpu_custom_call.1}
  #allocation0 [shape = 'u32[]', space=smem, size = 0x4, offset = 0x4, fixed_abs, tag = 'smem constant byte address 0x4 - core index']
  #allocation1 [shape = 'u32[72,128]{1,0:T(1,128)}', space=vmem, size = 0x9000, scoped, tag = 'internal scratch']
  %s0 = inlined_call_operand.hbm [shape: f32[4,8,32], index: 0, kind: input, shape index: {}]
  %s1 = inlined_call_operand.hbm [shape: f32[4,8,32], index: 1, kind: input, shape index: {}]
  %s2 = inlined_call_operand.hbm [shape: f32[1,4,4], index: 2, kind: output, shape index: {}]
  %s3 = sld [smem:[#allocation0]]
  $region26: #{tpu_custom_call.1} parent=0
    _
  %s5 = ssub.s32 1, %s3
  %s6 = scalar_select 0, %s5, %s3
  $region1: #{tpu_custom_call.1} parent=0
    #allocation2 [shape = 'u8[16384]{0}', space=vmem, size = 0x4000, scoped, tag = 'input window, operand 0, single buffered']
    #allocation3 [shape = 's32[1]{0}', space=sflag, size = 0x4, scoped, tag = 'scoped memory for tpu_custom_call.1']
    #allocation4 [shape = 's32[1]{0}', space=sflag, size = 0x4, scoped, tag = 'scoped memory for tpu_custom_call.1']
    #allocation5 [shape = 'u8[16384]{0}', space=vmem, size = 0x4000, scoped, tag = 'input window, operand 1, single buffered']
    #allocation6 [shape = 's32[1]{0}', space=sflag, size = 0x4, scoped, tag = 'scoped memory for tpu_custom_call.1']
    #allocation7 [shape = 'u8[2048]{0}', space=vmem, size = 0x800, scoped, tag = 'output window, operand 0, single buffered']
    %7 = vsyncpa [#allocation3], 0
    %8 = vsyncpa [#allocation6], 0
    %9 = vsyncpa [#allocation4], 0
    // Predicated region
    $region2: #{tpu_custom_call.1} parent=1 // pred_check
      _
    $region3: #{tpu_custom_call.1} parent=1 // pred_check_branch
      %11 = sbr.rel (0) target = $region5
    $region4: #{tpu_custom_call.1} parent=1 // pred_region
      %13 = vsyncadd [#allocation3], 0
      %s14 = sshll.u32 %s0, 4
      %s15 = int_to_ptr.hbm [resolvable:$true] %s14
      %s16 = sshll.u32 [#allocation2], 4
      %s17 = int_to_ptr.vmem [resolvable:$true] %s16
      %22 = dma.hbm_to_vmem [thread:$0]  %s15, 512, %s17, [#allocation3], 128, 128, 8
    $region5: #{tpu_custom_call.1} parent=1 // pred_fallthru
      _
    // Predicated region
    $region6: #{tpu_custom_call.1} parent=1 // pred_check
      _
    $region7: #{tpu_custom_call.1} parent=1 // pred_check_branch
      %24 = sbr.rel (0) target = $region9
    $region8: #{tpu_custom_call.1} parent=1 // pred_region
      %26 = vsyncadd [#allocation6], 0
      %s27 = sshll.u32 %s1, 4
      %s28 = int_to_ptr.hbm [resolvable:$true] %s27
      %s29 = sshll.u32 [#allocation5], 4
      %s30 = int_to_ptr.vmem [resolvable:$true] %s29
      %35 = dma.hbm_to_vmem [thread:$0]  %s28, 512, %s30, [#allocation6], 128, 128, 8
    $region9: #{tpu_custom_call.1} parent=1 // pred_fallthru
      _
    // Predicated region
    $region10: #{tpu_custom_call.1} parent=1 // pred_check
      _
    $region11: #{tpu_custom_call.1} parent=1 // pred_check_branch
      %37 = sbr.rel (0) target = $region13
    $region12: #{tpu_custom_call.1} parent=1 // pred_region
      %39 = dma.done [#allocation3], 512
    $region13: #{tpu_custom_call.1} parent=1 // pred_fallthru
      _
    // Predicated region
    $region14: #{tpu_custom_call.1} parent=1 // pred_check
      _
    $region15: #{tpu_custom_call.1} parent=1 // pred_check_branch
      %41 = sbr.rel (0) target = $region17
    $region16: #{tpu_custom_call.1} parent=1 // pred_region
      %43 = dma.done [#allocation6], 512
    $region17: #{tpu_custom_call.1} parent=1 // pred_fallthru
      _
    %v44 = vld [vmem:[#allocation2] sm:$0xff]
    %v45 = vld [vmem:[#allocation2 + $0x8] sm:$0xff]
    %v46 = vld [vmem:[#allocation2 + $0x10] sm:$0xff]
    %v47 = vld [vmem:[#allocation2 + $0x18] sm:$0xff]
    %v48 = vld [vmem:[#allocation5] sm:$0xff]
    %v49 = vld [vmem:[#allocation5 + $0x8] sm:$0xff]
    %v50 = vld [vmem:[#allocation5 + $0x10] sm:$0xff]
    %v51 = vld [vmem:[#allocation5 + $0x18] sm:$0xff]
    %v52 = vmul.f32 %v44, %v44
    %v53 = vmul.f32 %v45, %v45
    %v54 = vmul.f32 %v46, %v46
    %v55 = vmul.f32 %v47, %v47
    %vm56 = vcmask 261120
    %v57 = vsel %vm56, %v52, 0.0
    %58 = vadd.xlane.f32.xlu0 %v57
    %v59 = vpop.xlane.xlu0 %58
    %v60 = vsel %vm56, %v53, 0.0
    %61 = vadd.xlane.f32.xlu0 %v60
    %v62 = vpop.xlane.xlu0 %61
    %v63 = vsel %vm56, %v54, 0.0
    %64 = vadd.xlane.f32.xlu0 %v63
    %v65 = vpop.xlane.xlu0 %64
    %v66 = vsel %vm56, %v55, 0.0
    %67 = vadd.xlane.f32.xlu0 %v66
    %v68 = vpop.xlane.xlu0 %67
    %v69 = vmax.f32 %v59, 1e-24
    %v70 = vmax.f32 %v62, 1e-24
    %v71 = vmax.f32 %v65, 1e-24
    %v72 = vmax.f32 %v68, 1e-24
    %v73 = vrsqrt.pop %v69
    %v74 = vmul.f32 %v73, %v69
    %v75 = vmul.f32 %v74, %v73
    %v76 = vmul.f32 0.5, %v75
    %v77 = vsub.f32 1.5, %v76
    %v78 = vmul.f32 %v73, %v77
    %vm79 = vweird.f32 %v69
    %vm80 = vweird.f32 %v73
    %vm81 = vmor %vm79, %vm80
    %v82 = vsel %vm81, %v73, %v78
    %v83 = vrsqrt.pop %v70
    %v84 = vmul.f32 %v83, %v70
    %v85 = vmul.f32 %v84, %v83
    %v86 = vmul.f32 0.5, %v85
    %v87 = vsub.f32 1.5, %v86
    %v88 = vmul.f32 %v83, %v87
    %vm89 = vweird.f32 %v70
    %vm90 = vweird.f32 %v83
    %vm91 = vmor %vm89, %vm90
    %v92 = vsel %vm91, %v83, %v88
    %v93 = vrsqrt.pop %v71
    %v94 = vmul.f32 %v93, %v71
    %v95 = vmul.f32 %v94, %v93
    %v96 = vmul.f32 0.5, %v95
    %v97 = vsub.f32 1.5, %v96
    %v98 = vmul.f32 %v93, %v97
    %vm99 = vweird.f32 %v71
    %vm100 = vweird.f32 %v93
    %vm101 = vmor %vm99, %vm100
    %v102 = vsel %vm101, %v93, %v98
    %v103 = vrsqrt.pop %v72
    %v104 = vmul.f32 %v103, %v72
    %v105 = vmul.f32 %v104, %v103
    %v106 = vmul.f32 0.5, %v105
    %v107 = vsub.f32 1.5, %v106
    %v108 = vmul.f32 %v103, %v107
    %vm109 = vweird.f32 %v72
    %vm110 = vweird.f32 %v103
    %vm111 = vmor %vm109, %vm110
    %v112 = vsel %vm111, %v103, %v108
    %v113 = vmul.f32 %v48, %v48
    %v114 = vmul.f32 %v49, %v49
    %v115 = vmul.f32 %v50, %v50
    %v116 = vmul.f32 %v51, %v51
    %v117 = vsel %vm56, %v113, 0.0
    %118 = vadd.xlane.f32.xlu0 %v117
    %v119 = vpop.xlane.xlu0 %118
    %v120 = vsel %vm56, %v114, 0.0
    %121 = vadd.xlane.f32.xlu0 %v120
    %v122 = vpop.xlane.xlu0 %121
    %v123 = vsel %vm56, %v115, 0.0
    %124 = vadd.xlane.f32.xlu0 %v123
    %v125 = vpop.xlane.xlu0 %124
    %v126 = vsel %vm56, %v116, 0.0
    %127 = vadd.xlane.f32.xlu0 %v126
    %v128 = vpop.xlane.xlu0 %127
    %v129 = vmax.f32 %v119, 1e-24
    %v130 = vmax.f32 %v122, 1e-24
    %v131 = vmax.f32 %v125, 1e-24
    %v132 = vmax.f32 %v128, 1e-24
    %v133 = vrsqrt.pop %v129
    %v134 = vmul.f32 %v133, %v129
    %v135 = vmul.f32 %v134, %v133
    %v136 = vmul.f32 0.5, %v135
    %v137 = vsub.f32 1.5, %v136
    %v138 = vmul.f32 %v133, %v137
    %vm139 = vweird.f32 %v129
    %vm140 = vweird.f32 %v133
    %vm141 = vmor %vm139, %vm140
    %v142 = vsel %vm141, %v133, %v138
    %v143 = vrsqrt.pop %v130
    %v144 = vmul.f32 %v143, %v130
    %v145 = vmul.f32 %v144, %v143
    %v146 = vmul.f32 0.5, %v145
    %v147 = vsub.f32 1.5, %v146
    %v148 = vmul.f32 %v143, %v147
    %vm149 = vweird.f32 %v130
    %vm150 = vweird.f32 %v143
    %vm151 = vmor %vm149, %vm150
    %v152 = vsel %vm151, %v143, %v148
    %v153 = vrsqrt.pop %v131
    %v154 = vmul.f32 %v153, %v131
    %v155 = vmul.f32 %v154, %v153
    %v156 = vmul.f32 0.5, %v155
    %v157 = vsub.f32 1.5, %v156
    %v158 = vmul.f32 %v153, %v157
    %vm159 = vweird.f32 %v131
    %vm160 = vweird.f32 %v153
    %vm161 = vmor %vm159, %vm160
    %v162 = vsel %vm161, %v153, %v158
    %v163 = vrsqrt.pop %v132
    %v164 = vmul.f32 %v163, %v132
    %v165 = vmul.f32 %v164, %v163
    %v166 = vmul.f32 0.5, %v165
    %v167 = vsub.f32 1.5, %v166
    %v168 = vmul.f32 %v163, %v167
    %vm169 = vweird.f32 %v132
    %vm170 = vweird.f32 %v163
    %vm171 = vmor %vm169, %vm170
    %v172 = vsel %vm171, %v163, %v168
    %v173 = vmul.f32 %v44, %v82
    %v174 = vmul.f32 %v45, %v92
    %v175 = vmul.f32 %v46, %v102
    %v176 = vmul.f32 %v47, %v112
    %v177 = vmul.f32 %v48, %v142
    %v178 = vmul.f32 %v49, %v152
    %v179 = vmul.f32 %v50, %v162
    %v180 = vmul.f32 %v51, %v172
    %v181 = vrot.slane %v175, 4
    %vm182 = vcmask 1047556
    %v183 = vsel %vm182, %v181, %v173
    %v184 = vrot.slane %v173, 4
    %v185 = vsel %vm182, %v175, %v184
    %v187 = vunpack.c.l.s4 1983009808
    %v188 = vunpack.c.0.s8 %v187
    %v189 = vperm.slane %v183, %v188
    %v191 = vunpack.c.l.s4 1983009808
    %v192 = vunpack.c.0.s8 %v191
    %v193 = vperm.slane %v185, %v192
    %v194 = vrot.slane %v176, 4
    %v195 = vsel %vm182, %v194, %v174
    %v196 = vrot.slane %v174, 4
    %v197 = vsel %vm182, %v176, %v196
    %v199 = vunpack.c.l.s4 1983009808
    %v200 = vunpack.c.0.s8 %v199
    %v201 = vperm.slane %v195, %v200
    %v203 = vunpack.c.l.s4 1983009808
    %v204 = vunpack.c.0.s8 %v203
    %v205 = vperm.slane %v197, %v204
    %v206 = vrot.slane %v201, 4
    %v207 = vsel %vm182, %v206, %v189
    %v208 = vrot.slane %v189, 4
    %v209 = vsel %vm182, %v201, %v208
    %v211 = vunpack.c.l.s4 1934713408
    %v212 = vunpack.c.0.s8 %v211
    %v213 = vperm.slane %v207, %v212
    %v215 = vunpack.c.l.s4 1934713408
    %v216 = vunpack.c.0.s8 %v215
    %v217 = vperm.slane %v209, %v216
    %v218 = vrot.slane %v205, 4
    %v219 = vsel %vm182, %v218, %v193
    %v220 = vrot.slane %v193, 4
    %v221 = vsel %vm182, %v205, %v220
    %v223 = vunpack.c.l.s4 1934713408
    %v224 = vunpack.c.0.s8 %v223
    %v225 = vperm.slane %v219, %v224
    %v227 = vunpack.c.l.s4 1934713408
    %v228 = vunpack.c.0.s8 %v227
    %v229 = vperm.slane %v221, %v228
    %v230 = vrot.slane %v213, 4
    %v231 = vsel %vm182, 0.0, %v230
    %v232 = vrot.slane %v217, 4
    %v233 = vsel %vm182, 0.0, %v232
    %v234 = vrot.slane %v225, 4
    %v235 = vsel %vm182, 0.0, %v234
    %v236 = vrot.slane %v229, 4
    %v237 = vsel %vm182, 0.0, %v236
    %v238 = vrot.slane %v179, 4
    %v239 = vsel %vm182, %v238, %v177
    %v240 = vrot.slane %v177, 4
    %v241 = vsel %vm182, %v179, %v240
    %v243 = vunpack.c.l.s4 1983009808
    %v244 = vunpack.c.0.s8 %v243
    %v245 = vperm.slane %v239, %v244
    %v247 = vunpack.c.l.s4 1983009808
    %v248 = vunpack.c.0.s8 %v247
    %v249 = vperm.slane %v241, %v248
    %v250 = vrot.slane %v180, 4
    %v251 = vsel %vm182, %v250, %v178
    %v252 = vrot.slane %v178, 4
    %v253 = vsel %vm182, %v180, %v252
    %v255 = vunpack.c.l.s4 1983009808
    %v256 = vunpack.c.0.s8 %v255
    %v257 = vperm.slane %v251, %v256
    %v259 = vunpack.c.l.s4 1983009808
    %v260 = vunpack.c.0.s8 %v259
    %v261 = vperm.slane %v253, %v260
    %v262 = vrot.slane %v257, 4
    %v263 = vsel %vm182, %v262, %v245
    %v264 = vrot.slane %v245, 4
    %v265 = vsel %vm182, %v257, %v264
    %v267 = vunpack.c.l.s4 1934713408
    %v268 = vunpack.c.0.s8 %v267
    %v269 = vperm.slane %v263, %v268
    %v271 = vunpack.c.l.s4 1934713408
    %v272 = vunpack.c.0.s8 %v271
    %v273 = vperm.slane %v265, %v272
    %v274 = vrot.slane %v261, 4
    %v275 = vsel %vm182, %v274, %v249
    %v276 = vrot.slane %v249, 4
    %v277 = vsel %vm182, %v261, %v276
    %v279 = vunpack.c.l.s4 1934713408
    %v280 = vunpack.c.0.s8 %v279
    %v281 = vperm.slane %v275, %v280
    %v283 = vunpack.c.l.s4 1934713408
    %v284 = vunpack.c.0.s8 %v283
    %v285 = vperm.slane %v277, %v284
    %v286 = vrot.slane %v269, 4
    %v287 = vsel %vm182, 0.0, %v286
    %v288 = vrot.slane %v273, 4
    %v289 = vsel %vm182, 0.0, %v288
    %v290 = vrot.slane %v281, 4
    %v291 = vsel %vm182, 0.0, %v290
    %v292 = vrot.slane %v285, 4
    %v293 = vsel %vm182, 0.0, %v292
    %v295 = vsel %vm56, %v213, 0
    %297 = vmatpush.xpose.msra.mxu0 0.0
    %298 = vmatpush.xpose.msra.mxu0 0.0
    %299 = vmatpush.xpose.msra.mxu0 0.0
    %300 = vmatpush.xpose.msra.mxu0 0.0
    %301 = vmatpush.xpose.msra.mxu0 0.0
    %302 = vmatpush.xpose.msra.mxu0 0.0
    %303 = vmatpush.xpose.msra.mxu0 0.0
    %304 = vmatpush.xpose.msra.mxu0 0.0
    %305 = vmatpush.xpose.msra.mxu0 0.0
    %306 = vmatpush.xpose.msra.mxu0 0.0
    %307 = vmatpush.xpose.msra.mxu0 0.0
    %308 = vmatpush.xpose.msra.mxu0 0.0
    %309 = vmatpush.xpose.msra.mxu0 0.0
    %310 = vmatpush.xpose.msra.mxu0 0.0
    %311 = vmatpush.xpose.msra.mxu0 0.0
    %312 = vmatpush.xpose.msra.mxu0 %v295
    %313 = vmatmul.f32.gmra.mxu0 %v295
    %v314 = vpop.f32.mrf.mxu0
    %v315 = vadd.f32 0.0, %v314
    %316 = vdwg.mxu0
    %v318 = vsel %vm56, %v231, 0
    %320 = vmatpush.xpose.msra.mxu0 0.0
    %321 = vmatpush.xpose.msra.mxu0 0.0
    %322 = vmatpush.xpose.msra.mxu0 0.0
    %323 = vmatpush.xpose.msra.mxu0 0.0
    %324 = vmatpush.xpose.msra.mxu0 0.0
    %325 = vmatpush.xpose.msra.mxu0 0.0
    %326 = vmatpush.xpose.msra.mxu0 0.0
    %327 = vmatpush.xpose.msra.mxu0 0.0
    %328 = vmatpush.xpose.msra.mxu0 0.0
    %329 = vmatpush.xpose.msra.mxu0 0.0
    %330 = vmatpush.xpose.msra.mxu0 0.0
    %331 = vmatpush.xpose.msra.mxu0 0.0
    %332 = vmatpush.xpose.msra.mxu0 0.0
    %333 = vmatpush.xpose.msra.mxu0 0.0
    %334 = vmatpush.xpose.msra.mxu0 0.0
    %335 = vmatpush.xpose.msra.mxu0 %v318
    %336 = vmatmul.f32.gmra.mxu0 %v318
    %v337 = vpop.f32.mrf.mxu0
    %v338 = vadd.f32 0.0, %v337
    %339 = vdwg.mxu0
    %v341 = vsel %vm56, %v217, 0
    %343 = vmatpush.xpose.msra.mxu0 0.0
    %344 = vmatpush.xpose.msra.mxu0 0.0
    %345 = vmatpush.xpose.msra.mxu0 0.0
    %346 = vmatpush.xpose.msra.mxu0 0.0
    %347 = vmatpush.xpose.msra.mxu0 0.0
    %348 = vmatpush.xpose.msra.mxu0 0.0
    %349 = vmatpush.xpose.msra.mxu0 0.0
    %350 = vmatpush.xpose.msra.mxu0 0.0
    %351 = vmatpush.xpose.msra.mxu0 0.0
    %352 = vmatpush.xpose.msra.mxu0 0.0
    %353 = vmatpush.xpose.msra.mxu0 0.0
    %354 = vmatpush.xpose.msra.mxu0 0.0
    %355 = vmatpush.xpose.msra.mxu0 0.0
    %356 = vmatpush.xpose.msra.mxu0 0.0
    %357 = vmatpush.xpose.msra.mxu0 0.0
    %358 = vmatpush.xpose.msra.mxu0 %v341
    %359 = vmatmul.f32.gmra.mxu0 %v341
    %v360 = vpop.f32.mrf.mxu0
    %v361 = vadd.f32 0.0, %v360
    %362 = vdwg.mxu0
    %v364 = vsel %vm56, %v233, 0
    %366 = vmatpush.xpose.msra.mxu0 0.0
    %367 = vmatpush.xpose.msra.mxu0 0.0
    %368 = vmatpush.xpose.msra.mxu0 0.0
    %369 = vmatpush.xpose.msra.mxu0 0.0
    %370 = vmatpush.xpose.msra.mxu0 0.0
    %371 = vmatpush.xpose.msra.mxu0 0.0
    %372 = vmatpush.xpose.msra.mxu0 0.0
    %373 = vmatpush.xpose.msra.mxu0 0.0
    %374 = vmatpush.xpose.msra.mxu0 0.0
    %375 = vmatpush.xpose.msra.mxu0 0.0
    %376 = vmatpush.xpose.msra.mxu0 0.0
    %377 = vmatpush.xpose.msra.mxu0 0.0
    %378 = vmatpush.xpose.msra.mxu0 0.0
    %379 = vmatpush.xpose.msra.mxu0 0.0
    %380 = vmatpush.xpose.msra.mxu0 0.0
    %381 = vmatpush.xpose.msra.mxu0 %v364
    %382 = vmatmul.f32.gmra.mxu0 %v364
    %v383 = vpop.f32.mrf.mxu0
    %v384 = vadd.f32 0.0, %v383
    %385 = vdwg.mxu0
    %v387 = vsel %vm56, %v225, 0
    %389 = vmatpush.xpose.msra.mxu0 0.0
    %390 = vmatpush.xpose.msra.mxu0 0.0
    %391 = vmatpush.xpose.msra.mxu0 0.0
    %392 = vmatpush.xpose.msra.mxu0 0.0
    %393 = vmatpush.xpose.msra.mxu0 0.0
    %394 = vmatpush.xpose.msra.mxu0 0.0
    %395 = vmatpush.xpose.msra.mxu0 0.0
    %396 = vmatpush.xpose.msra.mxu0 0.0
    %397 = vmatpush.xpose.msra.mxu0 0.0
    %398 = vmatpush.xpose.msra.mxu0 0.0
    %399 = vmatpush.xpose.msra.mxu0 0.0
    %400 = vmatpush.xpose.msra.mxu0 0.0
    %401 = vmatpush.xpose.msra.mxu0 0.0
    %402 = vmatpush.xpose.msra.mxu0 0.0
    %403 = vmatpush.xpose.msra.mxu0 0.0
    %404 = vmatpush.xpose.msra.mxu0 %v387
    %405 = vmatmul.f32.gmra.mxu0 %v387
    %v406 = vpop.f32.mrf.mxu0
    %v407 = vadd.f32 0.0, %v406
    %408 = vdwg.mxu0
    %v410 = vsel %vm56, %v235, 0
    %412 = vmatpush.xpose.msra.mxu0 0.0
    %413 = vmatpush.xpose.msra.mxu0 0.0
    %414 = vmatpush.xpose.msra.mxu0 0.0
    %415 = vmatpush.xpose.msra.mxu0 0.0
    %416 = vmatpush.xpose.msra.mxu0 0.0
    %417 = vmatpush.xpose.msra.mxu0 0.0
    %418 = vmatpush.xpose.msra.mxu0 0.0
    %419 = vmatpush.xpose.msra.mxu0 0.0
    %420 = vmatpush.xpose.msra.mxu0 0.0
    %421 = vmatpush.xpose.msra.mxu0 0.0
    %422 = vmatpush.xpose.msra.mxu0 0.0
    %423 = vmatpush.xpose.msra.mxu0 0.0
    %424 = vmatpush.xpose.msra.mxu0 0.0
    %425 = vmatpush.xpose.msra.mxu0 0.0
    %426 = vmatpush.xpose.msra.mxu0 0.0
    %427 = vmatpush.xpose.msra.mxu0 %v410
    %428 = vmatmul.f32.gmra.mxu0 %v410
    %v429 = vpop.f32.mrf.mxu0
    %v430 = vadd.f32 0.0, %v429
    %431 = vdwg.mxu0
    %v433 = vsel %vm56, %v229, 0
    %435 = vmatpush.xpose.msra.mxu0 0.0
    %436 = vmatpush.xpose.msra.mxu0 0.0
    %437 = vmatpush.xpose.msra.mxu0 0.0
    %438 = vmatpush.xpose.msra.mxu0 0.0
    %439 = vmatpush.xpose.msra.mxu0 0.0
    %440 = vmatpush.xpose.msra.mxu0 0.0
    %441 = vmatpush.xpose.msra.mxu0 0.0
    %442 = vmatpush.xpose.msra.mxu0 0.0
    %443 = vmatpush.xpose.msra.mxu0 0.0
    %444 = vmatpush.xpose.msra.mxu0 0.0
    %445 = vmatpush.xpose.msra.mxu0 0.0
    %446 = vmatpush.xpose.msra.mxu0 0.0
    %447 = vmatpush.xpose.msra.mxu0 0.0
    %448 = vmatpush.xpose.msra.mxu0 0.0
    %449 = vmatpush.xpose.msra.mxu0 0.0
    %450 = vmatpush.xpose.msra.mxu0 %v433
    %451 = vmatmul.f32.gmra.mxu0 %v433
    %v452 = vpop.f32.mrf.mxu0
    %v453 = vadd.f32 0.0, %v452
    %454 = vdwg.mxu0
    %v456 = vsel %vm56, %v237, 0
    %458 = vmatpush.xpose.msra.mxu0 0.0
    %459 = vmatpush.xpose.msra.mxu0 0.0
    %460 = vmatpush.xpose.msra.mxu0 0.0
    %461 = vmatpush.xpose.msra.mxu0 0.0
    %462 = vmatpush.xpose.msra.mxu0 0.0
    %463 = vmatpush.xpose.msra.mxu0 0.0
    %464 = vmatpush.xpose.msra.mxu0 0.0
    %465 = vmatpush.xpose.msra.mxu0 0.0
    %466 = vmatpush.xpose.msra.mxu0 0.0
    %467 = vmatpush.xpose.msra.mxu0 0.0
    %468 = vmatpush.xpose.msra.mxu0 0.0
    %469 = vmatpush.xpose.msra.mxu0 0.0
    %470 = vmatpush.xpose.msra.mxu0 0.0
    %471 = vmatpush.xpose.msra.mxu0 0.0
    %472 = vmatpush.xpose.msra.mxu0 0.0
    %473 = vmatpush.xpose.msra.mxu0 %v456
    %474 = vmatmul.f32.gmra.mxu0 %v456
    %v475 = vpop.f32.mrf.mxu0
    %v476 = vadd.f32 0.0, %v475
    %477 = vdwg.mxu0
    %v479 = vsel %vm56, %v269, 0
    %481 = vmatpush.xpose.msra.mxu0 0.0
    %482 = vmatpush.xpose.msra.mxu0 0.0
    %483 = vmatpush.xpose.msra.mxu0 0.0
    %484 = vmatpush.xpose.msra.mxu0 0.0
    %485 = vmatpush.xpose.msra.mxu0 0.0
    %486 = vmatpush.xpose.msra.mxu0 0.0
    %487 = vmatpush.xpose.msra.mxu0 0.0
    %488 = vmatpush.xpose.msra.mxu0 0.0
    %489 = vmatpush.xpose.msra.mxu0 0.0
    %490 = vmatpush.xpose.msra.mxu0 0.0
    %491 = vmatpush.xpose.msra.mxu0 0.0
    %492 = vmatpush.xpose.msra.mxu0 0.0
    %493 = vmatpush.xpose.msra.mxu0 0.0
    %494 = vmatpush.xpose.msra.mxu0 0.0
    %495 = vmatpush.xpose.msra.mxu0 0.0
    %496 = vmatpush.xpose.msra.mxu0 %v479
    %497 = vmatmul.f32.gmra.mxu0 %v479
    %v498 = vpop.f32.mrf.mxu0
    %v499 = vadd.f32 0.0, %v498
    %500 = vdwg.mxu0
    %v502 = vsel %vm56, %v287, 0
    %504 = vmatpush.xpose.msra.mxu0 0.0
    %505 = vmatpush.xpose.msra.mxu0 0.0
    %506 = vmatpush.xpose.msra.mxu0 0.0
    %507 = vmatpush.xpose.msra.mxu0 0.0
    %508 = vmatpush.xpose.msra.mxu0 0.0
    %509 = vmatpush.xpose.msra.mxu0 0.0
    %510 = vmatpush.xpose.msra.mxu0 0.0
    %511 = vmatpush.xpose.msra.mxu0 0.0
    %512 = vmatpush.xpose.msra.mxu0 0.0
    %513 = vmatpush.xpose.msra.mxu0 0.0
    %514 = vmatpush.xpose.msra.mxu0 0.0
    %515 = vmatpush.xpose.msra.mxu0 0.0
    %516 = vmatpush.xpose.msra.mxu0 0.0
    %517 = vmatpush.xpose.msra.mxu0 0.0
    %518 = vmatpush.xpose.msra.mxu0 0.0
    %519 = vmatpush.xpose.msra.mxu0 %v502
    %520 = vmatmul.f32.gmra.mxu0 %v502
    %v521 = vpop.f32.mrf.mxu0
    %v522 = vadd.f32 0.0, %v521
    %523 = vdwg.mxu0
    %v525 = vsel %vm56, %v273, 0
    %527 = vmatpush.xpose.msra.mxu0 0.0
    %528 = vmatpush.xpose.msra.mxu0 0.0
    %529 = vmatpush.xpose.msra.mxu0 0.0
    %530 = vmatpush.xpose.msra.mxu0 0.0
    %531 = vmatpush.xpose.msra.mxu0 0.0
    %532 = vmatpush.xpose.msra.mxu0 0.0
    %533 = vmatpush.xpose.msra.mxu0 0.0
    %534 = vmatpush.xpose.msra.mxu0 0.0
    %535 = vmatpush.xpose.msra.mxu0 0.0
    %536 = vmatpush.xpose.msra.mxu0 0.0
    %537 = vmatpush.xpose.msra.mxu0 0.0
    %538 = vmatpush.xpose.msra.mxu0 0.0
    %539 = vmatpush.xpose.msra.mxu0 0.0
    %540 = vmatpush.xpose.msra.mxu0 0.0
    %541 = vmatpush.xpose.msra.mxu0 0.0
    %542 = vmatpush.xpose.msra.mxu0 %v525
    %543 = vmatmul.f32.gmra.mxu0 %v525
    %v544 = vpop.f32.mrf.mxu0
    %v545 = vadd.f32 0.0, %v544
    %546 = vdwg.mxu0
    %v548 = vsel %vm56, %v289, 0
    %550 = vmatpush.xpose.msra.mxu0 0.0
    %551 = vmatpush.xpose.msra.mxu0 0.0
    %552 = vmatpush.xpose.msra.mxu0 0.0
    %553 = vmatpush.xpose.msra.mxu0 0.0
    %554 = vmatpush.xpose.msra.mxu0 0.0
    %555 = vmatpush.xpose.msra.mxu0 0.0
    %556 = vmatpush.xpose.msra.mxu0 0.0
    %557 = vmatpush.xpose.msra.mxu0 0.0
    %558 = vmatpush.xpose.msra.mxu0 0.0
    %559 = vmatpush.xpose.msra.mxu0 0.0
    %560 = vmatpush.xpose.msra.mxu0 0.0
    %561 = vmatpush.xpose.msra.mxu0 0.0
    %562 = vmatpush.xpose.msra.mxu0 0.0
    %563 = vmatpush.xpose.msra.mxu0 0.0
    %564 = vmatpush.xpose.msra.mxu0 0.0
    %565 = vmatpush.xpose.msra.mxu0 %v548
    %566 = vmatmul.f32.gmra.mxu0 %v548
    %v567 = vpop.f32.mrf.mxu0
    %v568 = vadd.f32 0.0, %v567
    %569 = vdwg.mxu0
    %v571 = vsel %vm56, %v281, 0
    %573 = vmatpush.xpose.msra.mxu0 0.0
    %574 = vmatpush.xpose.msra.mxu0 0.0
    %575 = vmatpush.xpose.msra.mxu0 0.0
    %576 = vmatpush.xpose.msra.mxu0 0.0
    %577 = vmatpush.xpose.msra.mxu0 0.0
    %578 = vmatpush.xpose.msra.mxu0 0.0
    %579 = vmatpush.xpose.msra.mxu0 0.0
    %580 = vmatpush.xpose.msra.mxu0 0.0
    %581 = vmatpush.xpose.msra.mxu0 0.0
    %582 = vmatpush.xpose.msra.mxu0 0.0
    %583 = vmatpush.xpose.msra.mxu0 0.0
    %584 = vmatpush.xpose.msra.mxu0 0.0
    %585 = vmatpush.xpose.msra.mxu0 0.0
    %586 = vmatpush.xpose.msra.mxu0 0.0
    %587 = vmatpush.xpose.msra.mxu0 0.0
    %588 = vmatpush.xpose.msra.mxu0 %v571
    %589 = vmatmul.f32.gmra.mxu0 %v571
    %v590 = vpop.f32.mrf.mxu0
    %v591 = vadd.f32 0.0, %v590
    %592 = vdwg.mxu0
    %v594 = vsel %vm56, %v291, 0
    %596 = vmatpush.xpose.msra.mxu0 0.0
    %597 = vmatpush.xpose.msra.mxu0 0.0
    %598 = vmatpush.xpose.msra.mxu0 0.0
    %599 = vmatpush.xpose.msra.mxu0 0.0
    %600 = vmatpush.xpose.msra.mxu0 0.0
    %601 = vmatpush.xpose.msra.mxu0 0.0
    %602 = vmatpush.xpose.msra.mxu0 0.0
    %603 = vmatpush.xpose.msra.mxu0 0.0
    %604 = vmatpush.xpose.msra.mxu0 0.0
    %605 = vmatpush.xpose.msra.mxu0 0.0
    %606 = vmatpush.xpose.msra.mxu0 0.0
    %607 = vmatpush.xpose.msra.mxu0 0.0
    %608 = vmatpush.xpose.msra.mxu0 0.0
    %609 = vmatpush.xpose.msra.mxu0 0.0
    %610 = vmatpush.xpose.msra.mxu0 0.0
    %611 = vmatpush.xpose.msra.mxu0 %v594
    %612 = vmatmul.f32.gmra.mxu0 %v594
    %v613 = vpop.f32.mrf.mxu0
    %v614 = vadd.f32 0.0, %v613
    %615 = vdwg.mxu0
    %v617 = vsel %vm56, %v285, 0
    %619 = vmatpush.xpose.msra.mxu0 0.0
    %620 = vmatpush.xpose.msra.mxu0 0.0
    %621 = vmatpush.xpose.msra.mxu0 0.0
    %622 = vmatpush.xpose.msra.mxu0 0.0
    %623 = vmatpush.xpose.msra.mxu0 0.0
    %624 = vmatpush.xpose.msra.mxu0 0.0
    %625 = vmatpush.xpose.msra.mxu0 0.0
    %626 = vmatpush.xpose.msra.mxu0 0.0
    %627 = vmatpush.xpose.msra.mxu0 0.0
    %628 = vmatpush.xpose.msra.mxu0 0.0
    %629 = vmatpush.xpose.msra.mxu0 0.0
    %630 = vmatpush.xpose.msra.mxu0 0.0
    %631 = vmatpush.xpose.msra.mxu0 0.0
    %632 = vmatpush.xpose.msra.mxu0 0.0
    %633 = vmatpush.xpose.msra.mxu0 0.0
    %634 = vmatpush.xpose.msra.mxu0 %v617
    %635 = vmatmul.f32.gmra.mxu0 %v617
    %v636 = vpop.f32.mrf.mxu0
    %v637 = vadd.f32 0.0, %v636
    %638 = vdwg.mxu0
    %v640 = vsel %vm56, %v293, 0
    %642 = vmatpush.xpose.msra.mxu0 0.0
    %643 = vmatpush.xpose.msra.mxu0 0.0
    %644 = vmatpush.xpose.msra.mxu0 0.0
    %645 = vmatpush.xpose.msra.mxu0 0.0
    %646 = vmatpush.xpose.msra.mxu0 0.0
    %647 = vmatpush.xpose.msra.mxu0 0.0
    %648 = vmatpush.xpose.msra.mxu0 0.0
    %649 = vmatpush.xpose.msra.mxu0 0.0
    %650 = vmatpush.xpose.msra.mxu0 0.0
    %651 = vmatpush.xpose.msra.mxu0 0.0
    %652 = vmatpush.xpose.msra.mxu0 0.0
    %653 = vmatpush.xpose.msra.mxu0 0.0
    %654 = vmatpush.xpose.msra.mxu0 0.0
    %655 = vmatpush.xpose.msra.mxu0 0.0
    %656 = vmatpush.xpose.msra.mxu0 0.0
    %657 = vmatpush.xpose.msra.mxu0 %v640
    %658 = vmatmul.f32.gmra.mxu0 %v640
    %v659 = vpop.f32.mrf.mxu0
    %v660 = vadd.f32 0.0, %v659
    %661 = vdwg.mxu0
    %v662 = vsub.f32 %v315, %v499
    %v663 = vsub.f32 %v338, %v522
    %v664 = vsub.f32 %v361, %v545
    %v665 = vsub.f32 %v384, %v568
    %v666 = vsub.f32 %v407, %v591
    %v667 = vsub.f32 %v430, %v614
    %v668 = vsub.f32 %v453, %v637
    %v669 = vsub.f32 %v476, %v660
    %v670 = vand.u32 2147483647, %v662
    %v671 = vand.u32 2147483647, %v663
    %v672 = vand.u32 2147483647, %v664
    %v673 = vand.u32 2147483647, %v665
    %v674 = vand.u32 2147483647, %v666
    %v675 = vand.u32 2147483647, %v667
    %v676 = vand.u32 2147483647, %v668
    %v677 = vand.u32 2147483647, %v669
    %vm678 = vcmask 27648
    %v679 = vsel %vm678, %v670, 0.0
    %v680 = vsel %vm678, %v671, 0.0
    %v681 = vadd.f32 %v679, %v680
    %v682 = vsel %vm678, %v672, 0.0
    %v683 = vadd.f32 %v681, %v682
    %v684 = vsel %vm678, %v673, 0.0
    %v685 = vadd.f32 %v683, %v684
    %v686 = vsel %vm678, %v674, 0.0
    %v687 = vadd.f32 %v685, %v686
    %v688 = vsel %vm678, %v675, 0.0
    %v689 = vadd.f32 %v687, %v688
    %v690 = vsel %vm678, %v676, 0.0
    %v691 = vadd.f32 %v689, %v690
    %v692 = vsel %vm678, %v677, 0.0
    %v693 = vadd.f32 %v691, %v692
    %694 = vst.msk [vmem:[#allocation7] sm:$0xf] %vm678, %v693
    // Predicated region
    $region18: #{tpu_custom_call.1} parent=1 // pred_check
      _
    $region19: #{tpu_custom_call.1} parent=1 // pred_check_branch
      %696 = sbr.rel (0) target = $region21
    $region20: #{tpu_custom_call.1} parent=1 // pred_region
      %698 = vsyncadd [#allocation4], 0
      %s700 = sshll.u32 [#allocation7], 4
      %s701 = int_to_ptr.vmem [resolvable:$true] %s700
      %s702 = sshll.u32 %s2, 4
      %s703 = int_to_ptr.hbm [resolvable:$true] %s702
      %705 = dma.vmem_to_hbm [thread:$0]  %s701, 64, %s703, [#allocation4]
    $region21: #{tpu_custom_call.1} parent=1 // pred_fallthru
      _
    // Predicated region
    $region22: #{tpu_custom_call.1} parent=1 // pred_check
      _
    $region23: #{tpu_custom_call.1} parent=1 // pred_check_branch
      %707 = sbr.rel (0) target = $region25
    $region24: #{tpu_custom_call.1} parent=1 // pred_region
      %709 = dma.done [#allocation4], 64
    $region25: #{tpu_custom_call.1} parent=1 // pred_fallthru
      _
    %710 = vsyncpa [#allocation3], 1
    %711 = vsyncpa [#allocation6], 1
    %712 = vsyncpa [#allocation4], 1

</llo_original>
